<compile_context>
chip_gen: v5e
topology: v5e:2x2
jax: 0.10.0
libtpu: 0.0.40
codegen_flags: <defaults>
</compile_context>

<pallas_src>
import jax
import jax.numpy as jnp
from jax.experimental import pallas as pl
from jax.experimental.pallas import tpu as pltpu

LANE = 128  # pad the output (N) dimension of fc3 to a full lane width


def qnetwork_kernel(x_ref, w1_ref, b1_ref, w2_ref, b2_ref, o_ref):
    # fc1: (B, in) @ (in, hidden) + (1, hidden), then ReLU
    h = jnp.dot(x_ref[...], w1_ref[...], preferred_element_type=jnp.float32)
    h = jnp.maximum(h + b1_ref[...], 0.0)
    # fc3 (lane-padded N): (B, hidden) @ (hidden, 128) + (1, 128)
    y = jnp.dot(h, w2_ref[...], preferred_element_type=jnp.float32)
    o_ref[...] = (y + b2_ref[...]).astype(o_ref.dtype)


def qnetwork_forward(x, w1, b1, w2_pad, b2_pad, output_size):
    """x: (B, in). w2_pad/b2_pad are zero-padded to N=LANE. Returns (B, output_size)."""
    B = x.shape[0]
    n_pad = w2_pad.shape[1]
    vmem_spec = pl.BlockSpec(memory_space=pltpu.MemorySpace.VMEM)
    out = pl.pallas_call(
        qnetwork_kernel,
        out_shape=jax.ShapeDtypeStruct((B, n_pad), jnp.float32),
        in_specs=[vmem_spec] * 5,
        out_specs=vmem_spec,
    )(x, w1, b1, w2_pad, b2_pad)
    # Strip the lane padding added for a dense output store.
    return out[:, :output_size]


def init_params(key, input_size=9, hidden_size=128, output_size=9):
    """Deterministic init mimicking nn.Linear's uniform(-1/sqrt(fan_in), ...).

    Returns (w1, b1, w2_pad, b2_pad) where w2/b2 are zero-padded along the
    output (lane) dimension to LANE columns. Padding is done once here, so the
    per-call cost is zero and the kernel's output store is lane-dense.
    """
    k1, k2, k3, k4 = jax.random.split(key, 4)
    bound1 = 1.0 / jnp.sqrt(input_size)
    bound2 = 1.0 / jnp.sqrt(hidden_size)
    w1 = jax.random.uniform(k1, (input_size, hidden_size), jnp.float32, -bound1, bound1)
    b1 = jax.random.uniform(k2, (1, hidden_size), jnp.float32, -bound1, bound1)
    w2 = jax.random.uniform(k3, (hidden_size, output_size), jnp.float32, -bound2, bound2)
    b2 = jax.random.uniform(k4, (1, output_size), jnp.float32, -bound2, bound2)

    n_pad = max(LANE, output_size)
    w2_pad = jnp.zeros((hidden_size, n_pad), jnp.float32).at[:, :output_size].set(w2)
    b2_pad = jnp.zeros((1, n_pad), jnp.float32).at[:, :output_size].set(b2)
    return w1, b1, w2_pad, b2_pad


if __name__ == "__main__":
    key = jax.random.PRNGKey(0)
    kx, kp = jax.random.split(key)

    B, input_size, hidden_size, output_size = 8, 9, 128, 9
    x = jax.random.normal(kx, (B, input_size), jnp.float32)
    w1, b1, w2_pad, b2_pad = init_params(kp, input_size, hidden_size, output_size)

    out = qnetwork_forward(x, w1, b1, w2_pad, b2_pad, output_size)
    out = jax.block_until_ready(out)

    # Reference check against plain JAX (same math as the PyTorch forward).
    # Padded w2/b2 columns are zero, so slicing to output_size matches the
    # unpadded Linear exactly.
    ref = jnp.maximum(x @ w1 + b1, 0.0) @ w2_pad[:, :output_size] + b2_pad[:, :output_size]
    assert out.shape == (B, output_size)
    assert jnp.allclose(out, ref, atol=1e-5, rtol=1e-5)

    print("KERNEL_OK")
</pallas_src>

<mosaic_0001>
module attributes {stable_mosaic.version = 11 : i64} {
  func.func @qnetwork_kernel(%arg0: memref<8x9xf32, #tpu.memory_space<vmem>>, %arg1: memref<9x128xf32, #tpu.memory_space<vmem>>, %arg2: memref<1x128xf32, #tpu.memory_space<vmem>>, %arg3: memref<128x128xf32, #tpu.memory_space<vmem>>, %arg4: memref<1x128xf32, #tpu.memory_space<vmem>>, %arg5: memref<8x128xf32, #tpu.memory_space<vmem>>) attributes {dimension_semantics = [], scalar_prefetch = 0 : i64, scratch_operands = 0 : i64, tpu.core_type = #tpu.core_type<tc>} {
    %c0 = arith.constant 0 : index
    %c0_0 = arith.constant 0 : index
    %0 = vector.load %arg0[%c0, %c0_0] : memref<8x9xf32, #tpu.memory_space<vmem>>, vector<8x9xf32>
    %c0_1 = arith.constant 0 : index
    %c0_2 = arith.constant 0 : index
    %1 = vector.load %arg1[%c0_1, %c0_2] : memref<9x128xf32, #tpu.memory_space<vmem>>, vector<9x128xf32>
    %cst = arith.constant dense<0.000000e+00> : vector<8x128xf32>
    %2 = tpu.matmul %0, %1, %cst {dimension_numbers = #tpu.dot_dimension_numbers<[1], [0], [0], [1], [0, 0, 1, 1], [], []>} : vector<8x9xf32>, vector<9x128xf32>, vector<8x128xf32> -> vector<8x128xf32>
    %c0_3 = arith.constant 0 : index
    %c0_4 = arith.constant 0 : index
    %3 = vector.load %arg2[%c0_3, %c0_4] : memref<1x128xf32, #tpu.memory_space<vmem>>, vector<1x128xf32>
    %4 = vector.broadcast %3 : vector<1x128xf32> to vector<8x128xf32>
    %5 = arith.addf %2, %4 : vector<8x128xf32>
    %cst_5 = arith.constant 0.000000e+00 : f32
    %6 = vector.broadcast %cst_5 : f32 to vector<8x128xf32>
    %7 = arith.maximumf %5, %6 : vector<8x128xf32>
    %c0_6 = arith.constant 0 : index
    %c0_7 = arith.constant 0 : index
    %8 = vector.load %arg3[%c0_6, %c0_7] : memref<128x128xf32, #tpu.memory_space<vmem>>, vector<128x128xf32>
    %cst_8 = arith.constant dense<0.000000e+00> : vector<8x128xf32>
    %9 = tpu.matmul %7, %8, %cst_8 {dimension_numbers = #tpu.dot_dimension_numbers<[1], [0], [0], [1], [0, 0, 1, 1], [], []>} : vector<8x128xf32>, vector<128x128xf32>, vector<8x128xf32> -> vector<8x128xf32>
    %c0_9 = arith.constant 0 : index
    %c0_10 = arith.constant 0 : index
    %10 = vector.load %arg4[%c0_9, %c0_10] : memref<1x128xf32, #tpu.memory_space<vmem>>, vector<1x128xf32>
    %11 = vector.broadcast %10 : vector<1x128xf32> to vector<8x128xf32>
    %12 = arith.addf %9, %11 : vector<8x128xf32>
    %c0_11 = arith.constant 0 : index
    %c0_12 = arith.constant 0 : index
    %13 = vector.load %arg5[%c0_11, %c0_12] : memref<8x128xf32, #tpu.memory_space<vmem>>, vector<8x128xf32>
    tpu.vector_store %arg5[%c0_11, %c0_12], %12 {strides = array<i32>} : memref<8x128xf32, #tpu.memory_space<vmem>>, vector<8x128xf32>,
    return
  }
}

</mosaic_0001>

<llo_original>
// kernel: tpu_custom_call.1
$region0: #{tpu_custom_call.1}
  #allocation0 [shape = 'u32[]', space=smem, size = 0x4, offset = 0x4, fixed_abs, tag = 'smem constant byte address 0x4 - core index']
  #allocation1 [shape = 'u32[72,128]{1,0:T(1,128)}', space=vmem, size = 0x9000, scoped, tag = 'internal scratch']
  %s0 = inlined_call_operand.hbm [shape: f32[8,9], index: 0, kind: input, shape index: {}]
  %s1 = inlined_call_operand.hbm [shape: f32[9,128], index: 1, kind: input, shape index: {}]
  %s2 = inlined_call_operand.vmem [shape: f32[1,128], index: 2, kind: input, shape index: {}]
  %s3 = inlined_call_operand.hbm [shape: f32[128,128], index: 3, kind: input, shape index: {}]
  %s4 = inlined_call_operand.vmem [shape: f32[1,128], index: 4, kind: input, shape index: {}]
  %s5 = inlined_call_operand.hbm [shape: f32[8,128], index: 5, kind: output, shape index: {}]
  %s6 = sld [smem:[#allocation0]]
  $region42: #{tpu_custom_call.1} parent=0
    _
  %s8 = ssub.s32 1, %s6
  %s9 = scalar_select 0, %s8, %s6
  $region1: #{tpu_custom_call.1} parent=0
    #allocation2 [shape = 'u8[4096]{0}', space=vmem, size = 0x1000, scoped, tag = 'input window, operand 0, single buffered']
    #allocation3 [shape = 's32[1]{0}', space=sflag, size = 0x4, scoped, tag = 'scoped memory for tpu_custom_call.1']
    #allocation4 [shape = 's32[1]{0}', space=sflag, size = 0x4, scoped, tag = 'scoped memory for tpu_custom_call.1']
    #allocation5 [shape = 'u8[8192]{0}', space=vmem, size = 0x2000, scoped, tag = 'input window, operand 1, single buffered']
    #allocation6 [shape = 's32[1]{0}', space=sflag, size = 0x4, scoped, tag = 'scoped memory for tpu_custom_call.1']
    #allocation7 [shape = 'u8[65536]{0}', space=vmem, size = 0x10000, scoped, tag = 'input window, operand 3, single buffered']
    #allocation8 [shape = 'u8[4096]{0}', space=vmem, size = 0x1000, scoped, tag = 'output window, operand 0, single buffered']
    %10 = vsyncpa [#allocation3], 0
    %11 = vsyncpa [#allocation6], 0
    %12 = vsyncpa [#allocation4], 0
    // Predicated region
    $region2: #{tpu_custom_call.1} parent=1 // pred_check
      _
    $region3: #{tpu_custom_call.1} parent=1 // pred_check_branch
      %14 = sbr.rel (0) target = $region5
    $region4: #{tpu_custom_call.1} parent=1 // pred_region
      %16 = vsyncadd [#allocation3], 0
      %s18 = sshll.u32 %s0, 4
      %s19 = int_to_ptr.hbm [resolvable:$true] %s18
      %s20 = sshll.u32 [#allocation2], 4
      %s21 = int_to_ptr.vmem [resolvable:$true] %s20
      %23 = dma.hbm_to_vmem [thread:$0]  %s19, 128, %s21, [#allocation3]
    $region5: #{tpu_custom_call.1} parent=1 // pred_fallthru
      _
    // Predicated region
    $region6: #{tpu_custom_call.1} parent=1 // pred_check
      _
    $region7: #{tpu_custom_call.1} parent=1 // pred_check_branch
      %25 = sbr.rel (0) target = $region9
    $region8: #{tpu_custom_call.1} parent=1 // pred_region
      %27 = vsyncadd [#allocation6], 0
      %s28 = sshll.u32 %s1, 4
      %s29 = int_to_ptr.hbm [resolvable:$true] %s28
      %s30 = sshll.u32 [#allocation5], 4
      %s31 = int_to_ptr.vmem [resolvable:$true] %s30
      %36 = dma.hbm_to_vmem [thread:$0]  %s29, 256, %s31, [#allocation6], 128, 128, 8
    $region9: #{tpu_custom_call.1} parent=1 // pred_fallthru
      _
    // Predicated region
    $region10: #{tpu_custom_call.1} parent=1 // pred_check
      _
    $region11: #{tpu_custom_call.1} parent=1 // pred_check_branch
      %38 = sbr.rel (0) target = $region13
    $region12: #{tpu_custom_call.1} parent=1 // pred_region
      _
    $region13: #{tpu_custom_call.1} parent=1 // pred_fallthru
      _
    // Predicated region
    $region14: #{tpu_custom_call.1} parent=1 // pred_check
      _
    $region15: #{tpu_custom_call.1} parent=1 // pred_check_branch
      %40 = sbr.rel (0) target = $region17
    $region16: #{tpu_custom_call.1} parent=1 // pred_region
      %42 = vsyncadd [#allocation6], 0
      %s43 = sshll.u32 %s3, 4
      %s44 = int_to_ptr.hbm [resolvable:$true] %s43
      %s45 = sshll.u32 [#allocation7], 4
      %s46 = int_to_ptr.vmem [resolvable:$true] %s45
      %51 = dma.hbm_to_vmem [thread:$0]  %s44, 2048, %s46, [#allocation6], 128, 128, 8
    $region17: #{tpu_custom_call.1} parent=1 // pred_fallthru
      _
    // Predicated region
    $region18: #{tpu_custom_call.1} parent=1 // pred_check
      _
    $region19: #{tpu_custom_call.1} parent=1 // pred_check_branch
      %53 = sbr.rel (0) target = $region21
    $region20: #{tpu_custom_call.1} parent=1 // pred_region
      _
    $region21: #{tpu_custom_call.1} parent=1 // pred_fallthru
      _
    // Predicated region
    $region22: #{tpu_custom_call.1} parent=1 // pred_check
      _
    $region23: #{tpu_custom_call.1} parent=1 // pred_check_branch
      %55 = sbr.rel (0) target = $region25
    $region24: #{tpu_custom_call.1} parent=1 // pred_region
      %57 = dma.done [#allocation3], 128
    $region25: #{tpu_custom_call.1} parent=1 // pred_fallthru
      _
    // Predicated region
    $region26: #{tpu_custom_call.1} parent=1 // pred_check
      _
    $region27: #{tpu_custom_call.1} parent=1 // pred_check_branch
      %59 = sbr.rel (0) target = $region29
    $region28: #{tpu_custom_call.1} parent=1 // pred_region
      %61 = dma.done [#allocation6], 256
    $region29: #{tpu_custom_call.1} parent=1 // pred_fallthru
      _
    // Predicated region
    $region30: #{tpu_custom_call.1} parent=1 // pred_check
      _
    $region31: #{tpu_custom_call.1} parent=1 // pred_check_branch
      %63 = sbr.rel (0) target = $region33
    $region32: #{tpu_custom_call.1} parent=1 // pred_region
      %65 = dma.done [#allocation6], 2048
    $region33: #{tpu_custom_call.1} parent=1 // pred_fallthru
      _
    %v66 = vld [vmem:[#allocation2] sm:$0xff]
    %v67 = vld [vmem:[#allocation5] sm:$0xff]
    %v68 = vld [vmem:[#allocation5 + $0x8] sm:$0x1]
    %v69 = vld [vmem:[%s2] sm:$0x1]
    %v71 = vperm.slane %v69, 0
    %vm73 = vcmask 72704
    %v75 = vsel %vm73, %v66, 0
    %vm77 = vcmask 1040384
    %v79 = vsel %vm77, %v68, 0
    %81 = vmatpush.msra.mxu0 0.0
    %82 = vmatpush.msra.mxu0 0.0
    %83 = vmatpush.msra.mxu0 0.0
    %84 = vmatpush.msra.mxu0 0.0
    %85 = vmatpush.msra.mxu0 0.0
    %86 = vmatpush.msra.mxu0 0.0
    %87 = vmatpush.msra.mxu0 0.0
    %88 = vmatpush.msra.mxu0 0.0
    %89 = vmatpush.msra.mxu0 0.0
    %90 = vmatpush.msra.mxu0 0.0
    %91 = vmatpush.msra.mxu0 0.0
    %92 = vmatpush.msra.mxu0 0.0
    %93 = vmatpush.msra.mxu0 0.0
    %94 = vmatpush.msra.mxu0 0.0
    %95 = vmatpush.msra.mxu0 %v79
    %96 = vmatpush.msra.mxu0 %v67
    %97 = vmatmul.f32.gmra.mxu0 %v75
    %v98 = vpop.f32.mrf.mxu0
    %v99 = vadd.f32 %v71, %v98
    %100 = vdwg.mxu0
    %v101 = vmax.f32 %v99, 0.0
    %v102 = vld [vmem:[#allocation7] sm:$0xff]
    %v103 = vld [vmem:[#allocation7 + $0x8] sm:$0xff]
    %v104 = vld [vmem:[#allocation7 + $0x10] sm:$0xff]
    %v105 = vld [vmem:[#allocation7 + $0x18] sm:$0xff]
    %v106 = vld [vmem:[#allocation7 + $0x20] sm:$0xff]
    %v107 = vld [vmem:[#allocation7 + $0x28] sm:$0xff]
    %v108 = vld [vmem:[#allocation7 + $0x30] sm:$0xff]
    %v109 = vld [vmem:[#allocation7 + $0x38] sm:$0xff]
    %v110 = vld [vmem:[#allocation7 + $0x40] sm:$0xff]
    %v111 = vld [vmem:[#allocation7 + $0x48] sm:$0xff]
    %v112 = vld [vmem:[#allocation7 + $0x50] sm:$0xff]
    %v113 = vld [vmem:[#allocation7 + $0x58] sm:$0xff]
    %v114 = vld [vmem:[#allocation7 + $0x60] sm:$0xff]
    %v115 = vld [vmem:[#allocation7 + $0x68] sm:$0xff]
    %v116 = vld [vmem:[#allocation7 + $0x70] sm:$0xff]
    %v117 = vld [vmem:[#allocation7 + $0x78] sm:$0xff]
    %v118 = vld [vmem:[%s4] sm:$0x1]
    %v120 = vperm.slane %v118, 0
    %122 = vmatpush.msra.mxu0 %v117
    %123 = vmatpush.msra.mxu0 %v116
    %124 = vmatpush.msra.mxu0 %v115
    %125 = vmatpush.msra.mxu0 %v114
    %126 = vmatpush.msra.mxu0 %v113
    %127 = vmatpush.msra.mxu0 %v112
    %128 = vmatpush.msra.mxu0 %v111
    %129 = vmatpush.msra.mxu0 %v110
    %130 = vmatpush.msra.mxu0 %v109
    %131 = vmatpush.msra.mxu0 %v108
    %132 = vmatpush.msra.mxu0 %v107
    %133 = vmatpush.msra.mxu0 %v106
    %134 = vmatpush.msra.mxu0 %v105
    %135 = vmatpush.msra.mxu0 %v104
    %136 = vmatpush.msra.mxu0 %v103
    %137 = vmatpush.msra.mxu0 %v102
    %138 = vmatmul.f32.gmra.mxu0 %v101
    %v139 = vpop.f32.mrf.mxu0
    %v140 = vadd.f32 %v120, %v139
    %141 = vdwg.mxu0
    %142 = vst [vmem:[#allocation8] sm:$0xff] %v140
    // Predicated region
    $region34: #{tpu_custom_call.1} parent=1 // pred_check
      _
    $region35: #{tpu_custom_call.1} parent=1 // pred_check_branch
      %144 = sbr.rel (0) target = $region37
    $region36: #{tpu_custom_call.1} parent=1 // pred_region
      %146 = vsyncadd [#allocation4], 0
      %s148 = sshll.u32 [#allocation8], 4
      %s149 = int_to_ptr.vmem [resolvable:$true] %s148
      %s150 = sshll.u32 %s5, 4
      %s151 = int_to_ptr.hbm [resolvable:$true] %s150
      %153 = dma.vmem_to_hbm [thread:$0]  %s149, 128, %s151, [#allocation4]
    $region37: #{tpu_custom_call.1} parent=1 // pred_fallthru
      _
    // Predicated region
    $region38: #{tpu_custom_call.1} parent=1 // pred_check
      _
    $region39: #{tpu_custom_call.1} parent=1 // pred_check_branch
      %155 = sbr.rel (0) target = $region41
    $region40: #{tpu_custom_call.1} parent=1 // pred_region
      %157 = dma.done [#allocation4], 128
    $region41: #{tpu_custom_call.1} parent=1 // pred_fallthru
      _
    %158 = vsyncpa [#allocation3], 1
    %159 = vsyncpa [#allocation6], 1
    %160 = vsyncpa [#allocation4], 1

</llo_original>
